<compile_context>
chip_gen: v6e
topology: v6e:2x2x1
jax: 0.10.0
libtpu: 0.0.40
codegen_flags: <defaults>
</compile_context>

<pallas_src>
import functools

import jax
import jax.numpy as jnp
from jax.experimental import pallas as pl
from jax.experimental.pallas import tpu as pltpu  # noqa: F401  (TPU backend)


def _lstm_net_kernel(x_ref, wih_ref, whh_ref, b_ref, wfc_ref, bfc_ref,
                     out_ref, *, n_steps, batch):
    """Single-invocation LSTM + FC + LeakyReLU.

    x_ref   : (N*B, in_c)   time-major rows (row = t*B + b)
    wih_ref : (in_c, 4H)    W_ih^T, gate columns reordered to [i, f, o, g]
    whh_ref : (H, 4H)       W_hh^T, same column order
    b_ref   : (1, 4H)       b_ih + b_hh, same order
    wfc_ref : (H, out_c)    W_fc^T
    bfc_ref : (1, out_c)    b_fc
    out_ref : (N*B, out_c)  time-major rows; wrapper transposes to [B, N, out_c]
    """
    H = whh_ref.shape[0]
    G3 = 3 * H

    # One MXU push for the whole input projection (bias folded in here).
    xg = (jnp.dot(x_ref[...], wih_ref[...], preferred_element_type=jnp.float32)
          + b_ref[...])                               # [N*B, 4H]  (i,f,o,g)

    whh = whh_ref[...]                                # [H, 4H], loaded once

    h = jnp.zeros((batch, H), jnp.float32)
    c = jnp.zeros((batch, H), jnp.float32)
    h_list = []

    # Recurrence: fully unrolled (N static & small); h/c live in vregs.
    for t in range(n_steps):
        gates = (xg[t * batch:(t + 1) * batch, :]     # contiguous row slice
                 + jnp.dot(h, whh, preferred_element_type=jnp.float32))
        sg = jax.nn.sigmoid(gates[:, :G3])            # i,f,o : 3H lanes on EUP
        g_g = jnp.tanh(gates[:, G3:])                 # g     : H lanes on EUP
        i_g = sg[:, 0:H]
        f_g = sg[:, H:2 * H]
        o_g = sg[:, 2 * H:G3]
        c = f_g * c + i_g * g_g
        h = o_g * jnp.tanh(c)
        h_list.append(h)                              # stays in registers

    # One fused FC over all N*B hidden rows + LeakyReLU(0.01), single store.
    hs = jnp.concatenate(h_list, axis=0)              # [N*B, H]
    y = (jnp.dot(hs, wfc_ref[...], preferred_element_type=jnp.float32)
         + bfc_ref[...])                              # [N*B, out_c]
    out_ref[...] = jnp.where(y >= 0.0, y, 0.01 * y)   # one slab store


@jax.jit
def lstm_net_forward(flow, w_ih, w_hh, b_ih, b_hh, w_fc, b_fc):
    """flow: [B, N, T, C]; returns [B, N, out_c]."""
    B, N, T, C = flow.shape
    in_c = T * C
    H = w_hh.shape[1]
    out_c = w_fc.shape[0]

    # Time-major activation slab so per-step gate rows are contiguous.
    x = flow.reshape(B, N, in_c).transpose(1, 0, 2).reshape(N * B, in_c)

    # One-time weight prep: PyTorch gate order (i,f,g,o) -> kernel order
    # (i,f,o,g), so sigmoid covers the first 3H lanes and tanh the last H.
    def _reorder(w):
        i, f, g, o = jnp.split(w, 4, axis=0)
        return jnp.concatenate([i, f, o, g], axis=0)

    wih_r = _reorder(w_ih).T                          # [in_c, 4H]
    whh_r = _reorder(w_hh).T                          # [H, 4H]
    b_r = _reorder(b_ih + b_hh).reshape(1, 4 * H)     # fused LSTM bias
    wfc_t = w_fc.T                                    # [H, out_c]
    bfc = b_fc.reshape(1, out_c)

    kernel = functools.partial(_lstm_net_kernel, n_steps=N, batch=B)
    y = pl.pallas_call(
        kernel,
        out_shape=jax.ShapeDtypeStruct((N * B, out_c), jnp.float32),
    )(x, wih_r, whh_r, b_r, wfc_t, bfc)

    # Wrapper-side layout plumbing: (t-major rows) -> [B, N, out_c].
    return y.reshape(N, B, out_c).transpose(1, 0, 2)


def reference_forward(flow, w_ih, w_hh, b_ih, b_hh, w_fc, b_fc):
    """Pure-JAX reference matching torch.nn.LSTM + Linear + LeakyReLU."""
    B, N, T, C = flow.shape
    x = flow.reshape(B, N, T * C)
    H = w_hh.shape[1]

    def step(carry, x_t):
        h, c = carry
        gates = x_t @ w_ih.T + h @ w_hh.T + b_ih + b_hh
        i, f, g, o = jnp.split(gates, 4, axis=-1)
        i, f, o = jax.nn.sigmoid(i), jax.nn.sigmoid(f), jax.nn.sigmoid(o)
        g = jnp.tanh(g)
        c = f * c + i * g
        h = o * jnp.tanh(c)
        return (h, c), h

    h0 = jnp.zeros((B, H), jnp.float32)
    c0 = jnp.zeros((B, H), jnp.float32)
    _, hs = jax.lax.scan(step, (h0, c0), x.transpose(1, 0, 2))   # [N, B, H]
    hs = hs.transpose(1, 0, 2)                                   # [B, N, H]
    y = hs @ w_fc.T + b_fc
    return jnp.where(y >= 0, y, 0.01 * y)


if __name__ == "__main__":
    # Small shapes consistent with the module's forward: in_c must equal T*C.
    B, N, T, C = 2, 6, 8, 4
    in_c = T * C            # 32
    hid_c = 32
    out_c = 16

    key = jax.random.PRNGKey(0)
    k_x, k_ih, k_hh, k_bih, k_bhh, k_fw, k_fb = jax.random.split(key, 7)

    # Deterministic parameter init (PyTorch-style U(-1/sqrt(H), 1/sqrt(H))).
    s = 1.0 / jnp.sqrt(hid_c)
    w_ih = jax.random.uniform(k_ih, (4 * hid_c, in_c), jnp.float32, -s, s)
    w_hh = jax.random.uniform(k_hh, (4 * hid_c, hid_c), jnp.float32, -s, s)
    b_ih = jax.random.uniform(k_bih, (4 * hid_c,), jnp.float32, -s, s)
    b_hh = jax.random.uniform(k_bhh, (4 * hid_c,), jnp.float32, -s, s)
    w_fc = jax.random.uniform(k_fw, (out_c, hid_c), jnp.float32, -s, s)
    b_fc = jax.random.uniform(k_fb, (out_c,), jnp.float32, -s, s)

    flow_x = jax.random.normal(k_x, (B, N, T, C), jnp.float32)

    out = lstm_net_forward(flow_x, w_ih, w_hh, b_ih, b_hh, w_fc, b_fc)
    out = jax.block_until_ready(out)

    ref = reference_forward(flow_x, w_ih, w_hh, b_ih, b_hh, w_fc, b_fc)
    assert out.shape == (B, N, out_c), out.shape
    assert jnp.allclose(out, ref, atol=1e-5, rtol=1e-5), (
        float(jnp.max(jnp.abs(out - ref))))

    print("KERNEL_OK")
</pallas_src>

<mosaic_0001>
module attributes {stable_mosaic.version = 11 : i64} {
  func.func @_lstm_net_kernel(%arg0: memref<12x32xf32, #tpu.memory_space<vmem>>, %arg1: memref<32x128xf32, #tpu.memory_space<vmem>>, %arg2: memref<32x128xf32, #tpu.memory_space<vmem>>, %arg3: memref<1x128xf32, #tpu.memory_space<vmem>>, %arg4: memref<32x16xf32, #tpu.memory_space<vmem>>, %arg5: memref<1x16xf32, #tpu.memory_space<vmem>>, %arg6: memref<12x16xf32, #tpu.memory_space<vmem>>) attributes {dimension_semantics = [], scalar_prefetch = 0 : i64, scratch_operands = 0 : i64, tpu.core_type = #tpu.core_type<tc>} {
    %c0 = arith.constant 0 : index
    %c0_0 = arith.constant 0 : index
    %0 = vector.load %arg0[%c0, %c0_0] : memref<12x32xf32, #tpu.memory_space<vmem>>, vector<12x32xf32>
    %c0_1 = arith.constant 0 : index
    %c0_2 = arith.constant 0 : index
    %1 = vector.load %arg1[%c0_1, %c0_2] : memref<32x128xf32, #tpu.memory_space<vmem>>, vector<32x128xf32>
    %cst = arith.constant dense<0.000000e+00> : vector<12x128xf32>
    %2 = tpu.matmul %0, %1, %cst {dimension_numbers = #tpu.dot_dimension_numbers<[1], [0], [0], [1], [0, 0, 1, 1], [], []>} : vector<12x32xf32>, vector<32x128xf32>, vector<12x128xf32> -> vector<12x128xf32>
    %c0_3 = arith.constant 0 : index
    %c0_4 = arith.constant 0 : index
    %3 = vector.load %arg3[%c0_3, %c0_4] : memref<1x128xf32, #tpu.memory_space<vmem>>, vector<1x128xf32>
    %4 = vector.broadcast %3 : vector<1x128xf32> to vector<12x128xf32>
    %5 = arith.addf %2, %4 : vector<12x128xf32>
    %c0_5 = arith.constant 0 : index
    %c0_6 = arith.constant 0 : index
    %6 = vector.load %arg2[%c0_5, %c0_6] : memref<32x128xf32, #tpu.memory_space<vmem>>, vector<32x128xf32>
    %cst_7 = arith.constant 0.000000e+00 : f32
    %7 = vector.broadcast %cst_7 : f32 to vector<2x32xf32>
    %cst_8 = arith.constant 0.000000e+00 : f32
    %8 = vector.broadcast %cst_8 : f32 to vector<2x32xf32>
    %9 = vector.extract_strided_slice %5 {offsets = [0, 0], sizes = [2, 128], strides = [1, 1]} : vector<12x128xf32> to vector<2x128xf32>
    %cst_9 = arith.constant dense<0.000000e+00> : vector<2x128xf32>
    %10 = tpu.matmul %7, %6, %cst_9 {dimension_numbers = #tpu.dot_dimension_numbers<[1], [0], [0], [1], [0, 0, 1, 1], [], []>} : vector<2x32xf32>, vector<32x128xf32>, vector<2x128xf32> -> vector<2x128xf32>
    %11 = arith.addf %9, %10 : vector<2x128xf32>
    %12 = vector.extract_strided_slice %11 {offsets = [0, 0], sizes = [2, 96], strides = [1, 1]} : vector<2x128xf32> to vector<2x96xf32>
    %13 = arith.negf %12 : vector<2x96xf32>
    %14 = math.exp %13 : vector<2x96xf32>
    %cst_10 = arith.constant 1.000000e+00 : f32
    %15 = vector.broadcast %cst_10 : f32 to vector<2x96xf32>
    %16 = arith.addf %15, %14 : vector<2x96xf32>
    %17 = arith.divf %15, %16 : vector<2x96xf32>
    %18 = vector.extract_strided_slice %11 {offsets = [0, 96], sizes = [2, 32], strides = [1, 1]} : vector<2x128xf32> to vector<2x32xf32>
    %19 = math.tanh %18 : vector<2x32xf32>
    %20 = vector.extract_strided_slice %17 {offsets = [0, 0], sizes = [2, 32], strides = [1, 1]} : vector<2x96xf32> to vector<2x32xf32>
    %21 = vector.extract_strided_slice %17 {offsets = [0, 32], sizes = [2, 32], strides = [1, 1]} : vector<2x96xf32> to vector<2x32xf32>
    %22 = vector.extract_strided_slice %17 {offsets = [0, 64], sizes = [2, 32], strides = [1, 1]} : vector<2x96xf32> to vector<2x32xf32>
    %23 = arith.mulf %21, %8 : vector<2x32xf32>
    %24 = arith.mulf %20, %19 : vector<2x32xf32>
    %25 = arith.addf %23, %24 : vector<2x32xf32>
    %26 = math.tanh %25 : vector<2x32xf32>
    %27 = arith.mulf %22, %26 : vector<2x32xf32>
    %28 = vector.extract_strided_slice %5 {offsets = [2, 0], sizes = [2, 128], strides = [1, 1]} : vector<12x128xf32> to vector<2x128xf32>
    %cst_11 = arith.constant dense<0.000000e+00> : vector<2x128xf32>
    %29 = tpu.matmul %27, %6, %cst_11 {dimension_numbers = #tpu.dot_dimension_numbers<[1], [0], [0], [1], [0, 0, 1, 1], [], []>} : vector<2x32xf32>, vector<32x128xf32>, vector<2x128xf32> -> vector<2x128xf32>
    %30 = arith.addf %28, %29 : vector<2x128xf32>
    %31 = vector.extract_strided_slice %30 {offsets = [0, 0], sizes = [2, 96], strides = [1, 1]} : vector<2x128xf32> to vector<2x96xf32>
    %32 = arith.negf %31 : vector<2x96xf32>
    %33 = math.exp %32 : vector<2x96xf32>
    %cst_12 = arith.constant 1.000000e+00 : f32
    %34 = vector.broadcast %cst_12 : f32 to vector<2x96xf32>
    %35 = arith.addf %34, %33 : vector<2x96xf32>
    %36 = arith.divf %34, %35 : vector<2x96xf32>
    %37 = vector.extract_strided_slice %30 {offsets = [0, 96], sizes = [2, 32], strides = [1, 1]} : vector<2x128xf32> to vector<2x32xf32>
    %38 = math.tanh %37 : vector<2x32xf32>
    %39 = vector.extract_strided_slice %36 {offsets = [0, 0], sizes = [2, 32], strides = [1, 1]} : vector<2x96xf32> to vector<2x32xf32>
    %40 = vector.extract_strided_slice %36 {offsets = [0, 32], sizes = [2, 32], strides = [1, 1]} : vector<2x96xf32> to vector<2x32xf32>
    %41 = vector.extract_strided_slice %36 {offsets = [0, 64], sizes = [2, 32], strides = [1, 1]} : vector<2x96xf32> to vector<2x32xf32>
    %42 = arith.mulf %40, %25 : vector<2x32xf32>
    %43 = arith.mulf %39, %38 : vector<2x32xf32>
    %44 = arith.addf %42, %43 : vector<2x32xf32>
    %45 = math.tanh %44 : vector<2x32xf32>
    %46 = arith.mulf %41, %45 : vector<2x32xf32>
    %47 = vector.extract_strided_slice %5 {offsets = [4, 0], sizes = [2, 128], strides = [1, 1]} : vector<12x128xf32> to vector<2x128xf32>
    %cst_13 = arith.constant dense<0.000000e+00> : vector<2x128xf32>
    %48 = tpu.matmul %46, %6, %cst_13 {dimension_numbers = #tpu.dot_dimension_numbers<[1], [0], [0], [1], [0, 0, 1, 1], [], []>} : vector<2x32xf32>, vector<32x128xf32>, vector<2x128xf32> -> vector<2x128xf32>
    %49 = arith.addf %47, %48 : vector<2x128xf32>
    %50 = vector.extract_strided_slice %49 {offsets = [0, 0], sizes = [2, 96], strides = [1, 1]} : vector<2x128xf32> to vector<2x96xf32>
    %51 = arith.negf %50 : vector<2x96xf32>
    %52 = math.exp %51 : vector<2x96xf32>
    %cst_14 = arith.constant 1.000000e+00 : f32
    %53 = vector.broadcast %cst_14 : f32 to vector<2x96xf32>
    %54 = arith.addf %53, %52 : vector<2x96xf32>
    %55 = arith.divf %53, %54 : vector<2x96xf32>
    %56 = vector.extract_strided_slice %49 {offsets = [0, 96], sizes = [2, 32], strides = [1, 1]} : vector<2x128xf32> to vector<2x32xf32>
    %57 = math.tanh %56 : vector<2x32xf32>
    %58 = vector.extract_strided_slice %55 {offsets = [0, 0], sizes = [2, 32], strides = [1, 1]} : vector<2x96xf32> to vector<2x32xf32>
    %59 = vector.extract_strided_slice %55 {offsets = [0, 32], sizes = [2, 32], strides = [1, 1]} : vector<2x96xf32> to vector<2x32xf32>
    %60 = vector.extract_strided_slice %55 {offsets = [0, 64], sizes = [2, 32], strides = [1, 1]} : vector<2x96xf32> to vector<2x32xf32>
    %61 = arith.mulf %59, %44 : vector<2x32xf32>
    %62 = arith.mulf %58, %57 : vector<2x32xf32>
    %63 = arith.addf %61, %62 : vector<2x32xf32>
    %64 = math.tanh %63 : vector<2x32xf32>
    %65 = arith.mulf %60, %64 : vector<2x32xf32>
    %66 = vector.extract_strided_slice %5 {offsets = [6, 0], sizes = [2, 128], strides = [1, 1]} : vector<12x128xf32> to vector<2x128xf32>
    %cst_15 = arith.constant dense<0.000000e+00> : vector<2x128xf32>
    %67 = tpu.matmul %65, %6, %cst_15 {dimension_numbers = #tpu.dot_dimension_numbers<[1], [0], [0], [1], [0, 0, 1, 1], [], []>} : vector<2x32xf32>, vector<32x128xf32>, vector<2x128xf32> -> vector<2x128xf32>
    %68 = arith.addf %66, %67 : vector<2x128xf32>
    %69 = vector.extract_strided_slice %68 {offsets = [0, 0], sizes = [2, 96], strides = [1, 1]} : vector<2x128xf32> to vector<2x96xf32>
    %70 = arith.negf %69 : vector<2x96xf32>
    %71 = math.exp %70 : vector<2x96xf32>
    %cst_16 = arith.constant 1.000000e+00 : f32
    %72 = vector.broadcast %cst_16 : f32 to vector<2x96xf32>
    %73 = arith.addf %72, %71 : vector<2x96xf32>
    %74 = arith.divf %72, %73 : vector<2x96xf32>
    %75 = vector.extract_strided_slice %68 {offsets = [0, 96], sizes = [2, 32], strides = [1, 1]} : vector<2x128xf32> to vector<2x32xf32>
    %76 = math.tanh %75 : vector<2x32xf32>
    %77 = vector.extract_strided_slice %74 {offsets = [0, 0], sizes = [2, 32], strides = [1, 1]} : vector<2x96xf32> to vector<2x32xf32>
    %78 = vector.extract_strided_slice %74 {offsets = [0, 32], sizes = [2, 32], strides = [1, 1]} : vector<2x96xf32> to vector<2x32xf32>
    %79 = vector.extract_strided_slice %74 {offsets = [0, 64], sizes = [2, 32], strides = [1, 1]} : vector<2x96xf32> to vector<2x32xf32>
    %80 = arith.mulf %78, %63 : vector<2x32xf32>
    %81 = arith.mulf %77, %76 : vector<2x32xf32>
    %82 = arith.addf %80, %81 : vector<2x32xf32>
    %83 = math.tanh %82 : vector<2x32xf32>
    %84 = arith.mulf %79, %83 : vector<2x32xf32>
    %85 = vector.extract_strided_slice %5 {offsets = [8, 0], sizes = [2, 128], strides = [1, 1]} : vector<12x128xf32> to vector<2x128xf32>
    %cst_17 = arith.constant dense<0.000000e+00> : vector<2x128xf32>
    %86 = tpu.matmul %84, %6, %cst_17 {dimension_numbers = #tpu.dot_dimension_numbers<[1], [0], [0], [1], [0, 0, 1, 1], [], []>} : vector<2x32xf32>, vector<32x128xf32>, vector<2x128xf32> -> vector<2x128xf32>
    %87 = arith.addf %85, %86 : vector<2x128xf32>
    %88 = vector.extract_strided_slice %87 {offsets = [0, 0], sizes = [2, 96], strides = [1, 1]} : vector<2x128xf32> to vector<2x96xf32>
    %89 = arith.negf %88 : vector<2x96xf32>
    %90 = math.exp %89 : vector<2x96xf32>
    %cst_18 = arith.constant 1.000000e+00 : f32
    %91 = vector.broadcast %cst_18 : f32 to vector<2x96xf32>
    %92 = arith.addf %91, %90 : vector<2x96xf32>
    %93 = arith.divf %91, %92 : vector<2x96xf32>
    %94 = vector.extract_strided_slice %87 {offsets = [0, 96], sizes = [2, 32], strides = [1, 1]} : vector<2x128xf32> to vector<2x32xf32>
    %95 = math.tanh %94 : vector<2x32xf32>
    %96 = vector.extract_strided_slice %93 {offsets = [0, 0], sizes = [2, 32], strides = [1, 1]} : vector<2x96xf32> to vector<2x32xf32>
    %97 = vector.extract_strided_slice %93 {offsets = [0, 32], sizes = [2, 32], strides = [1, 1]} : vector<2x96xf32> to vector<2x32xf32>
    %98 = vector.extract_strided_slice %93 {offsets = [0, 64], sizes = [2, 32], strides = [1, 1]} : vector<2x96xf32> to vector<2x32xf32>
    %99 = arith.mulf %97, %82 : vector<2x32xf32>
    %100 = arith.mulf %96, %95 : vector<2x32xf32>
    %101 = arith.addf %99, %100 : vector<2x32xf32>
    %102 = math.tanh %101 : vector<2x32xf32>
    %103 = arith.mulf %98, %102 : vector<2x32xf32>
    %104 = vector.extract_strided_slice %5 {offsets = [10, 0], sizes = [2, 128], strides = [1, 1]} : vector<12x128xf32> to vector<2x128xf32>
    %cst_19 = arith.constant dense<0.000000e+00> : vector<2x128xf32>
    %105 = tpu.matmul %103, %6, %cst_19 {dimension_numbers = #tpu.dot_dimension_numbers<[1], [0], [0], [1], [0, 0, 1, 1], [], []>} : vector<2x32xf32>, vector<32x128xf32>, vector<2x128xf32> -> vector<2x128xf32>
    %106 = arith.addf %104, %105 : vector<2x128xf32>
    %107 = vector.extract_strided_slice %106 {offsets = [0, 0], sizes = [2, 96], strides = [1, 1]} : vector<2x128xf32> to vector<2x96xf32>
    %108 = arith.negf %107 : vector<2x96xf32>
    %109 = math.exp %108 : vector<2x96xf32>
    %cst_20 = arith.constant 1.000000e+00 : f32
    %110 = vector.broadcast %cst_20 : f32 to vector<2x96xf32>
    %111 = arith.addf %110, %109 : vector<2x96xf32>
    %112 = arith.divf %110, %111 : vector<2x96xf32>
    %113 = vector.extract_strided_slice %106 {offsets = [0, 96], sizes = [2, 32], strides = [1, 1]} : vector<2x128xf32> to vector<2x32xf32>
    %114 = math.tanh %113 : vector<2x32xf32>
    %115 = vector.extract_strided_slice %112 {offsets = [0, 0], sizes = [2, 32], strides = [1, 1]} : vector<2x96xf32> to vector<2x32xf32>
    %116 = vector.extract_strided_slice %112 {offsets = [0, 32], sizes = [2, 32], strides = [1, 1]} : vector<2x96xf32> to vector<2x32xf32>
    %117 = vector.extract_strided_slice %112 {offsets = [0, 64], sizes = [2, 32], strides = [1, 1]} : vector<2x96xf32> to vector<2x32xf32>
    %118 = arith.mulf %116, %101 : vector<2x32xf32>
    %119 = arith.mulf %115, %114 : vector<2x32xf32>
    %120 = arith.addf %118, %119 : vector<2x32xf32>
    %121 = math.tanh %120 : vector<2x32xf32>
    %122 = arith.mulf %117, %121 : vector<2x32xf32>
    %123 = tpu.concatenate %27, %46, %65, %84, %103, %122 in 0 : vector<2x32xf32>, vector<2x32xf32>, vector<2x32xf32>, vector<2x32xf32>, vector<2x32xf32>, vector<2x32xf32> -> vector<12x32xf32>
    %c0_21 = arith.constant 0 : index
    %c0_22 = arith.constant 0 : index
    %124 = vector.load %arg4[%c0_21, %c0_22] : memref<32x16xf32, #tpu.memory_space<vmem>>, vector<32x16xf32>
    %cst_23 = arith.constant dense<0.000000e+00> : vector<12x16xf32>
    %125 = tpu.matmul %123, %124, %cst_23 {dimension_numbers = #tpu.dot_dimension_numbers<[1], [0], [0], [1], [0, 0, 1, 1], [], []>} : vector<12x32xf32>, vector<32x16xf32>, vector<12x16xf32> -> vector<12x16xf32>
    %c0_24 = arith.constant 0 : index
    %c0_25 = arith.constant 0 : index
    %126 = vector.load %arg5[%c0_24, %c0_25] : memref<1x16xf32, #tpu.memory_space<vmem>>, vector<1x16xf32>
    %127 = vector.broadcast %126 : vector<1x16xf32> to vector<12x16xf32>
    %128 = arith.addf %125, %127 : vector<12x16xf32>
    %cst_26 = arith.constant 0.000000e+00 : f32
    %129 = vector.broadcast %cst_26 : f32 to vector<12x16xf32>
    %130 = arith.cmpf oge, %128, %129 : vector<12x16xf32>
    %cst_27 = arith.constant 0.00999999977 : f32
    %131 = vector.broadcast %cst_27 : f32 to vector<12x16xf32>
    %132 = arith.mulf %131, %128 : vector<12x16xf32>
    %133 = arith.select %130, %128, %132 : vector<12x16xi1>, vector<12x16xf32>
    %c0_28 = arith.constant 0 : index
    %c0_29 = arith.constant 0 : index
    %134 = vector.load %arg6[%c0_28, %c0_29] : memref<12x16xf32, #tpu.memory_space<vmem>>, vector<12x16xf32>
    tpu.vector_store %arg6[%c0_28, %c0_29], %133 {strides = array<i32>} : memref<12x16xf32, #tpu.memory_space<vmem>>, vector<12x16xf32>,
    return
  }
}

</mosaic_0001>

<llo_original>
// kernel: lstm_net_forward.1
$region0: #{lstm_net_forward.1}
  #allocation0 [shape = 'u32[]', space=smem, size = 0x4, offset = 0x4, fixed_abs, tag = 'smem constant byte address 0x4 - core index']
  #allocation1 [shape = 'u32[144,128]{1,0:T(1,128)}', space=vmem, size = 0x12000, scoped, tag = 'internal scratch']
  %s0 = inlined_call_operand.vmem [shape: f32[12,32], index: 0, kind: input, shape index: {}]
  %s1 = inlined_call_operand.vmem [shape: f32[32,128], index: 1, kind: input, shape index: {}]
  %s2 = inlined_call_operand.vmem [shape: f32[32,128], index: 2, kind: input, shape index: {}]
  %s3 = inlined_call_operand.vmem [shape: f32[1,128], index: 3, kind: input, shape index: {}]
  %s4 = inlined_call_operand.vmem [shape: f32[32,16], index: 4, kind: input, shape index: {}]
  %s5 = inlined_call_operand.vmem [shape: f32[1,16], index: 5, kind: input, shape index: {}]
  %s6 = inlined_call_operand.vmem [shape: f32[12,16], index: 6, kind: output, shape index: {}]
  %s7 = sld [smem:[#allocation0]]
  $region34: #{lstm_net_forward.1} parent=0
    _
  %s9 = ssub.s32 1, %s7
  %s10 = scalar_select 0, %s9, %s7
  // Predicated region
  $region2: #{lstm_net_forward.1} parent=0 // pred_check
    _
  $region3: #{lstm_net_forward.1} parent=0 // pred_check_branch
    %12 = sbr.rel (0) target = $region5
  $region4: #{lstm_net_forward.1} parent=0 // pred_region
    _
  $region5: #{lstm_net_forward.1} parent=0 // pred_fallthru
    _
  // Predicated region
  $region6: #{lstm_net_forward.1} parent=0 // pred_check
    _
  $region7: #{lstm_net_forward.1} parent=0 // pred_check_branch
    %14 = sbr.rel (0) target = $region9
  $region8: #{lstm_net_forward.1} parent=0 // pred_region
    _
  $region9: #{lstm_net_forward.1} parent=0 // pred_fallthru
    _
  // Predicated region
  $region10: #{lstm_net_forward.1} parent=0 // pred_check
    _
  $region11: #{lstm_net_forward.1} parent=0 // pred_check_branch
    %16 = sbr.rel (0) target = $region13
  $region12: #{lstm_net_forward.1} parent=0 // pred_region
    _
  $region13: #{lstm_net_forward.1} parent=0 // pred_fallthru
    _
  // Predicated region
  $region14: #{lstm_net_forward.1} parent=0 // pred_check
    _
  $region15: #{lstm_net_forward.1} parent=0 // pred_check_branch
    %18 = sbr.rel (0) target = $region17
  $region16: #{lstm_net_forward.1} parent=0 // pred_region
    _
  $region17: #{lstm_net_forward.1} parent=0 // pred_fallthru
    _
  // Predicated region
  $region18: #{lstm_net_forward.1} parent=0 // pred_check
    _
  $region19: #{lstm_net_forward.1} parent=0 // pred_check_branch
    %20 = sbr.rel (0) target = $region21
  $region20: #{lstm_net_forward.1} parent=0 // pred_region
    _
  $region21: #{lstm_net_forward.1} parent=0 // pred_fallthru
    _
  // Predicated region
  $region22: #{lstm_net_forward.1} parent=0 // pred_check
    _
  $region23: #{lstm_net_forward.1} parent=0 // pred_check_branch
    %22 = sbr.rel (0) target = $region25
  $region24: #{lstm_net_forward.1} parent=0 // pred_region
    _
  $region25: #{lstm_net_forward.1} parent=0 // pred_fallthru
    _
  %v23 = vld [vmem:[%s0] sm:$0xff]
  %v24 = vld [vmem:[%s0 + $0x8] sm:$0xf]
  %v25 = vld [vmem:[%s1] sm:$0xff]
  %v26 = vld [vmem:[%s1 + $0x8] sm:$0xff]
  %v27 = vld [vmem:[%s1 + $0x10] sm:$0xff]
  %v28 = vld [vmem:[%s1 + $0x18] sm:$0xff]
  %v29 = vld [vmem:[%s3] sm:$0x1]
  %v31 = vlaneseq
  %v32 = vshrl.u32 %v31, 7
  %v33 = vsub.s32 0, %v32
  %v34 = vrot.slane %v29, %v33
  %vm36 = vcmask 261120
  %v38 = vsel %vm36, %v23, 0
  %v41 = vsel %vm36, %v24, 0
  %43 = vmatprep.subr.mxu0 0.0
  %44 = vmatpush1.msra.mxu0 0.0
  %45 = vmatprep.subr.mxu0 0.0
  %46 = vmatpush1.msra.mxu0 0.0
  %47 = vmatprep.subr.mxu0 0.0
  %48 = vmatpush1.msra.mxu0 0.0
  %49 = vmatprep.subr.mxu0 0.0
  %50 = vmatpush1.msra.mxu0 0.0
  %51 = vmatprep.subr.mxu0 0.0
  %52 = vmatpush1.msra.mxu0 0.0
  %53 = vmatprep.subr.mxu0 0.0
  %54 = vmatpush1.msra.mxu0 0.0
  %55 = vmatprep.subr.mxu0 0.0
  %56 = vmatpush1.msra.mxu0 0.0
  %57 = vmatprep.subr.mxu0 0.0
  %58 = vmatpush1.msra.mxu0 0.0
  %59 = vmatprep.subr.mxu0 0.0
  %60 = vmatpush1.msra.mxu0 0.0
  %61 = vmatprep.subr.mxu0 0.0
  %62 = vmatpush1.msra.mxu0 0.0
  %63 = vmatprep.subr.mxu0 0.0
  %64 = vmatpush1.msra.mxu0 0.0
  %65 = vmatprep.subr.mxu0 0.0
  %66 = vmatpush1.msra.mxu0 0.0
  %67 = vmatprep.subr.mxu0 0.0
  %68 = vmatpush1.msra.mxu0 %v28
  %69 = vmatprep.subr.mxu0 0.0
  %70 = vmatpush1.msra.mxu0 %v27
  %71 = vmatprep.subr.mxu0 0.0
  %72 = vmatpush1.msra.mxu0 %v26
  %73 = vmatprep.subr.mxu0 0.0
  %74 = vmatpush1.msra.mxu0 %v25
  %75 = vmatprep.subr.mxu0 0.0
  %76 = vmatpush2.msra.mxu0 0.0
  %77 = vmatprep.subr.mxu0 0.0
  %78 = vmatpush2.msra.mxu0 0.0
  %79 = vmatprep.subr.mxu0 0.0
  %80 = vmatpush2.msra.mxu0 0.0
  %81 = vmatprep.subr.mxu0 0.0
  %82 = vmatpush2.msra.mxu0 0.0
  %83 = vmatprep.subr.mxu0 0.0
  %84 = vmatpush2.msra.mxu0 0.0
  %85 = vmatprep.subr.mxu0 0.0
  %86 = vmatpush2.msra.mxu0 0.0
  %87 = vmatprep.subr.mxu0 0.0
  %88 = vmatpush2.msra.mxu0 0.0
  %89 = vmatprep.subr.mxu0 0.0
  %90 = vmatpush2.msra.mxu0 0.0
  %91 = vmatprep.subr.mxu0 0.0
  %92 = vmatpush2.msra.mxu0 0.0
  %93 = vmatprep.subr.mxu0 0.0
  %94 = vmatpush2.msra.mxu0 0.0
  %95 = vmatprep.subr.mxu0 0.0
  %96 = vmatpush2.msra.mxu0 0.0
  %97 = vmatprep.subr.mxu0 0.0
  %98 = vmatpush2.msra.mxu0 0.0
  %99 = vmatprep.subr.mxu0 0.0
  %100 = vmatpush2.msra.mxu0 0.0
  %101 = vmatprep.subr.mxu0 0.0
  %102 = vmatpush2.msra.mxu0 0.0
  %103 = vmatprep.subr.mxu0 0.0
  %104 = vmatpush2.msra.mxu0 0.0
  %105 = vmatprep.subr.mxu0 0.0
  %106 = vmatpush2.msra.mxu0 0.0
  %107 = vmatprep.mubr.f32.mxu0 0.0
  %108 = vmatmul.mubr.f32.gmra.mxu0 %v38
  %v109 = vpop.f32.mrf.mxu0
  %v110 = vadd.f32 %v34, %v109
  %v111 = vpop.f32.mrf.mxu0
  %112 = vmatprep.mubr.f32.mxu0 0.0
  %113 = vmatmul.mubr.f32.gmra.mxu0 %v41
  %v114 = vpop.f32.mrf.mxu0
  %v115 = vadd.f32 %v34, %v114
  %v116 = vpop.f32.mrf.mxu0
  %117 = vdwg.mxu0
  %v118 = vld [vmem:[%s2] sm:$0xff]
  %v119 = vld [vmem:[%s2 + $0x8] sm:$0xff]
  %v120 = vld [vmem:[%s2 + $0x10] sm:$0xff]
  %v121 = vld [vmem:[%s2 + $0x18] sm:$0xff]
  %v123 = vsel %vm36, 0.0, 0
  %125 = vmatprep.subr.mxu0 0.0
  %126 = vmatpush1.msra.mxu0 0.0
  %127 = vmatprep.subr.mxu0 0.0
  %128 = vmatpush1.msra.mxu0 0.0
  %129 = vmatprep.subr.mxu0 0.0
  %130 = vmatpush1.msra.mxu0 0.0
  %131 = vmatprep.subr.mxu0 0.0
  %132 = vmatpush1.msra.mxu0 0.0
  %133 = vmatprep.subr.mxu0 0.0
  %134 = vmatpush1.msra.mxu0 0.0
  %135 = vmatprep.subr.mxu0 0.0
  %136 = vmatpush1.msra.mxu0 0.0
  %137 = vmatprep.subr.mxu0 0.0
  %138 = vmatpush1.msra.mxu0 0.0
  %139 = vmatprep.subr.mxu0 0.0
  %140 = vmatpush1.msra.mxu0 0.0
  %141 = vmatprep.subr.mxu0 0.0
  %142 = vmatpush1.msra.mxu0 0.0
  %143 = vmatprep.subr.mxu0 0.0
  %144 = vmatpush1.msra.mxu0 0.0
  %145 = vmatprep.subr.mxu0 0.0
  %146 = vmatpush1.msra.mxu0 0.0
  %147 = vmatprep.subr.mxu0 0.0
  %148 = vmatpush1.msra.mxu0 0.0
  %149 = vmatprep.subr.mxu0 0.0
  %150 = vmatpush1.msra.mxu0 %v121
  %151 = vmatprep.subr.mxu0 0.0
  %152 = vmatpush1.msra.mxu0 %v120
  %153 = vmatprep.subr.mxu0 0.0
  %154 = vmatpush1.msra.mxu0 %v119
  %155 = vmatprep.subr.mxu0 0.0
  %156 = vmatpush1.msra.mxu0 %v118
  %157 = vmatprep.subr.mxu0 0.0
  %158 = vmatpush2.msra.mxu0 0.0
  %159 = vmatprep.subr.mxu0 0.0
  %160 = vmatpush2.msra.mxu0 0.0
  %161 = vmatprep.subr.mxu0 0.0
  %162 = vmatpush2.msra.mxu0 0.0
  %163 = vmatprep.subr.mxu0 0.0
  %164 = vmatpush2.msra.mxu0 0.0
  %165 = vmatprep.subr.mxu0 0.0
  %166 = vmatpush2.msra.mxu0 0.0
  %167 = vmatprep.subr.mxu0 0.0
  %168 = vmatpush2.msra.mxu0 0.0
  %169 = vmatprep.subr.mxu0 0.0
  %170 = vmatpush2.msra.mxu0 0.0
  %171 = vmatprep.subr.mxu0 0.0
  %172 = vmatpush2.msra.mxu0 0.0
  %173 = vmatprep.subr.mxu0 0.0
  %174 = vmatpush2.msra.mxu0 0.0
  %175 = vmatprep.subr.mxu0 0.0
  %176 = vmatpush2.msra.mxu0 0.0
  %177 = vmatprep.subr.mxu0 0.0
  %178 = vmatpush2.msra.mxu0 0.0
  %179 = vmatprep.subr.mxu0 0.0
  %180 = vmatpush2.msra.mxu0 0.0
  %181 = vmatprep.subr.mxu0 0.0
  %182 = vmatpush2.msra.mxu0 0.0
  %183 = vmatprep.subr.mxu0 0.0
  %184 = vmatpush2.msra.mxu0 0.0
  %185 = vmatprep.subr.mxu0 0.0
  %186 = vmatpush2.msra.mxu0 0.0
  %187 = vmatprep.subr.mxu0 0.0
  %188 = vmatpush2.msra.mxu0 0.0
  %189 = vmatprep.mubr.f32.mxu0 0.0
  %190 = vmatmul.mubr.f32.gmra.mxu0 %v123
  %v191 = vpop.f32.mrf.mxu0
  %v192 = vadd.f32 0.0, %v191
  %v193 = vpop.f32.mrf.mxu0
  %194 = vdwg.mxu0
  %v195 = vadd.f32 %v110, %v192
  %v196 = vxor.u32 %v195, 2147483648
  %v197 = vmul.f32 %v196, 1.442695
  %v198 = vpow.pop %v197
  %v199 = vadd.f32 %v198, 1.0
  %v200 = vrcp.pop %v199
  %v201 = vmul.f32 1.0, %v200
  %v202 = vtanh.pop %v195
  %v203 = vmul.f32 %v201, 0.0
  %205 = vrot.lane.b32.xlu0 %v202, 32
  %v206 = vpop.permute.xlu0 %205
  %v208 = vmul.f32 %v201, %v206
  %210 = vrot.lane.b32.xlu0 %v208, 32
  %v211 = vpop.permute.xlu0 %210
  %v213 = vadd.f32 %v203, %v211
  %v214 = vtanh.pop %v213
  %216 = vrot.lane.b32.xlu0 %v214, 32
  %v217 = vpop.permute.xlu0 %216
  %v219 = vmul.f32 %v201, %v217
  %221 = vrot.lane.b32.xlu0 %v219, 64
  %v222 = vpop.permute.xlu0 %221
  %v223 = vsel %vm36, %v222, 0
  %225 = vmatprep.subr.mxu0 0.0
  %226 = vmatpush1.msra.mxu0 0.0
  %227 = vmatprep.subr.mxu0 0.0
  %228 = vmatpush1.msra.mxu0 0.0
  %229 = vmatprep.subr.mxu0 0.0
  %230 = vmatpush1.msra.mxu0 0.0
  %231 = vmatprep.subr.mxu0 0.0
  %232 = vmatpush1.msra.mxu0 0.0
  %233 = vmatprep.subr.mxu0 0.0
  %234 = vmatpush1.msra.mxu0 0.0
  %235 = vmatprep.subr.mxu0 0.0
  %236 = vmatpush1.msra.mxu0 0.0
  %237 = vmatprep.subr.mxu0 0.0
  %238 = vmatpush1.msra.mxu0 0.0
  %239 = vmatprep.subr.mxu0 0.0
  %240 = vmatpush1.msra.mxu0 0.0
  %241 = vmatprep.subr.mxu0 0.0
  %242 = vmatpush1.msra.mxu0 0.0
  %243 = vmatprep.subr.mxu0 0.0
  %244 = vmatpush1.msra.mxu0 0.0
  %245 = vmatprep.subr.mxu0 0.0
  %246 = vmatpush1.msra.mxu0 0.0
  %247 = vmatprep.subr.mxu0 0.0
  %248 = vmatpush1.msra.mxu0 0.0
  %249 = vmatprep.subr.mxu0 0.0
  %250 = vmatpush1.msra.mxu0 %v121
  %251 = vmatprep.subr.mxu0 0.0
  %252 = vmatpush1.msra.mxu0 %v120
  %253 = vmatprep.subr.mxu0 0.0
  %254 = vmatpush1.msra.mxu0 %v119
  %255 = vmatprep.subr.mxu0 0.0
  %256 = vmatpush1.msra.mxu0 %v118
  %257 = vmatprep.subr.mxu0 0.0
  %258 = vmatpush2.msra.mxu0 0.0
  %259 = vmatprep.subr.mxu0 0.0
  %260 = vmatpush2.msra.mxu0 0.0
  %261 = vmatprep.subr.mxu0 0.0
  %262 = vmatpush2.msra.mxu0 0.0
  %263 = vmatprep.subr.mxu0 0.0
  %264 = vmatpush2.msra.mxu0 0.0
  %265 = vmatprep.subr.mxu0 0.0
  %266 = vmatpush2.msra.mxu0 0.0
  %267 = vmatprep.subr.mxu0 0.0
  %268 = vmatpush2.msra.mxu0 0.0
  %269 = vmatprep.subr.mxu0 0.0
  %270 = vmatpush2.msra.mxu0 0.0
  %271 = vmatprep.subr.mxu0 0.0
  %272 = vmatpush2.msra.mxu0 0.0
  %273 = vmatprep.subr.mxu0 0.0
  %274 = vmatpush2.msra.mxu0 0.0
  %275 = vmatprep.subr.mxu0 0.0
  %276 = vmatpush2.msra.mxu0 0.0
  %277 = vmatprep.subr.mxu0 0.0
  %278 = vmatpush2.msra.mxu0 0.0
  %279 = vmatprep.subr.mxu0 0.0
  %280 = vmatpush2.msra.mxu0 0.0
  %281 = vmatprep.subr.mxu0 0.0
  %282 = vmatpush2.msra.mxu0 0.0
  %283 = vmatprep.subr.mxu0 0.0
  %284 = vmatpush2.msra.mxu0 0.0
  %285 = vmatprep.subr.mxu0 0.0
  %286 = vmatpush2.msra.mxu0 0.0
  %287 = vmatprep.subr.mxu0 0.0
  %288 = vmatpush2.msra.mxu0 0.0
  %289 = vmatprep.mubr.f32.mxu0 0.0
  %290 = vmatmul.mubr.f32.gmra.mxu0 %v223
  %v291 = vpop.f32.mrf.mxu0
  %v292 = vadd.f32 0.0, %v291
  %v293 = vpop.f32.mrf.mxu0
  %294 = vdwg.mxu0
  %v296 = vrot.slane %v292, 6
  %v298 = vadd.f32 %v110, %v296
  %v299 = vxor.u32 %v298, 2147483648
  %v300 = vmul.f32 %v299, 1.442695
  %v301 = vpow.pop %v300
  %v302 = vadd.f32 %v301, 1.0
  %v303 = vrcp.pop %v302
  %v304 = vmul.f32 1.0, %v303
  %v305 = vtanh.pop %v298
  %v307 = vrot.slane %v213, 6
  %v309 = vmul.f32 %v304, %v307
  %311 = vrot.lane.b32.xlu0 %v305, 32
  %v312 = vpop.permute.xlu0 %311
  %v314 = vmul.f32 %v304, %v312
  %316 = vrot.lane.b32.xlu0 %v314, 32
  %v317 = vpop.permute.xlu0 %316
  %v319 = vadd.f32 %v309, %v317
  %v320 = vtanh.pop %v319
  %322 = vrot.lane.b32.xlu0 %v320, 32
  %v323 = vpop.permute.xlu0 %322
  %v325 = vmul.f32 %v304, %v323
  %v327 = vrot.slane %v325, 2
  %328 = vrot.lane.b32.xlu0 %v327, 64
  %v329 = vpop.permute.xlu0 %328
  %v330 = vsel %vm36, %v329, 0
  %332 = vmatprep.subr.mxu0 0.0
  %333 = vmatpush1.msra.mxu0 0.0
  %334 = vmatprep.subr.mxu0 0.0
  %335 = vmatpush1.msra.mxu0 0.0
  %336 = vmatprep.subr.mxu0 0.0
  %337 = vmatpush1.msra.mxu0 0.0
  %338 = vmatprep.subr.mxu0 0.0
  %339 = vmatpush1.msra.mxu0 0.0
  %340 = vmatprep.subr.mxu0 0.0
  %341 = vmatpush1.msra.mxu0 0.0
  %342 = vmatprep.subr.mxu0 0.0
  %343 = vmatpush1.msra.mxu0 0.0
  %344 = vmatprep.subr.mxu0 0.0
  %345 = vmatpush1.msra.mxu0 0.0
  %346 = vmatprep.subr.mxu0 0.0
  %347 = vmatpush1.msra.mxu0 0.0
  %348 = vmatprep.subr.mxu0 0.0
  %349 = vmatpush1.msra.mxu0 0.0
  %350 = vmatprep.subr.mxu0 0.0
  %351 = vmatpush1.msra.mxu0 0.0
  %352 = vmatprep.subr.mxu0 0.0
  %353 = vmatpush1.msra.mxu0 0.0
  %354 = vmatprep.subr.mxu0 0.0
  %355 = vmatpush1.msra.mxu0 0.0
  %356 = vmatprep.subr.mxu0 0.0
  %357 = vmatpush1.msra.mxu0 %v121
  %358 = vmatprep.subr.mxu0 0.0
  %359 = vmatpush1.msra.mxu0 %v120
  %360 = vmatprep.subr.mxu0 0.0
  %361 = vmatpush1.msra.mxu0 %v119
  %362 = vmatprep.subr.mxu0 0.0
  %363 = vmatpush1.msra.mxu0 %v118
  %364 = vmatprep.subr.mxu0 0.0
  %365 = vmatpush2.msra.mxu0 0.0
  %366 = vmatprep.subr.mxu0 0.0
  %367 = vmatpush2.msra.mxu0 0.0
  %368 = vmatprep.subr.mxu0 0.0
  %369 = vmatpush2.msra.mxu0 0.0
  %370 = vmatprep.subr.mxu0 0.0
  %371 = vmatpush2.msra.mxu0 0.0
  %372 = vmatprep.subr.mxu0 0.0
  %373 = vmatpush2.msra.mxu0 0.0
  %374 = vmatprep.subr.mxu0 0.0
  %375 = vmatpush2.msra.mxu0 0.0
  %376 = vmatprep.subr.mxu0 0.0
  %377 = vmatpush2.msra.mxu0 0.0
  %378 = vmatprep.subr.mxu0 0.0
  %379 = vmatpush2.msra.mxu0 0.0
  %380 = vmatprep.subr.mxu0 0.0
  %381 = vmatpush2.msra.mxu0 0.0
  %382 = vmatprep.subr.mxu0 0.0
  %383 = vmatpush2.msra.mxu0 0.0
  %384 = vmatprep.subr.mxu0 0.0
  %385 = vmatpush2.msra.mxu0 0.0
  %386 = vmatprep.subr.mxu0 0.0
  %387 = vmatpush2.msra.mxu0 0.0
  %388 = vmatprep.subr.mxu0 0.0
  %389 = vmatpush2.msra.mxu0 0.0
  %390 = vmatprep.subr.mxu0 0.0
  %391 = vmatpush2.msra.mxu0 0.0
  %392 = vmatprep.subr.mxu0 0.0
  %393 = vmatpush2.msra.mxu0 0.0
  %394 = vmatprep.subr.mxu0 0.0
  %395 = vmatpush2.msra.mxu0 0.0
  %396 = vmatprep.mubr.f32.mxu0 0.0
  %397 = vmatmul.mubr.f32.gmra.mxu0 %v330
  %v398 = vpop.f32.mrf.mxu0
  %v399 = vadd.f32 0.0, %v398
  %v400 = vpop.f32.mrf.mxu0
  %401 = vdwg.mxu0
  %v403 = vrot.slane %v399, 4
  %v405 = vadd.f32 %v110, %v403
  %v406 = vxor.u32 %v405, 2147483648
  %v407 = vmul.f32 %v406, 1.442695
  %v408 = vpow.pop %v407
  %v409 = vadd.f32 %v408, 1.0
  %v410 = vrcp.pop %v409
  %v411 = vmul.f32 1.0, %v410
  %v412 = vtanh.pop %v405
  %v414 = vrot.slane %v319, 6
  %v416 = vmul.f32 %v411, %v414
  %418 = vrot.lane.b32.xlu0 %v412, 32
  %v419 = vpop.permute.xlu0 %418
  %v421 = vmul.f32 %v411, %v419
  %423 = vrot.lane.b32.xlu0 %v421, 32
  %v424 = vpop.permute.xlu0 %423
  %v426 = vadd.f32 %v416, %v424
  %v427 = vtanh.pop %v426
  %429 = vrot.lane.b32.xlu0 %v427, 32
  %v430 = vpop.permute.xlu0 %429
  %v432 = vmul.f32 %v411, %v430
  %v434 = vrot.slane %v432, 4
  %435 = vrot.lane.b32.xlu0 %v434, 64
  %v436 = vpop.permute.xlu0 %435
  %v437 = vsel %vm36, %v436, 0
  %439 = vmatprep.subr.mxu0 0.0
  %440 = vmatpush1.msra.mxu0 0.0
  %441 = vmatprep.subr.mxu0 0.0
  %442 = vmatpush1.msra.mxu0 0.0
  %443 = vmatprep.subr.mxu0 0.0
  %444 = vmatpush1.msra.mxu0 0.0
  %445 = vmatprep.subr.mxu0 0.0
  %446 = vmatpush1.msra.mxu0 0.0
  %447 = vmatprep.subr.mxu0 0.0
  %448 = vmatpush1.msra.mxu0 0.0
  %449 = vmatprep.subr.mxu0 0.0
  %450 = vmatpush1.msra.mxu0 0.0
  %451 = vmatprep.subr.mxu0 0.0
  %452 = vmatpush1.msra.mxu0 0.0
  %453 = vmatprep.subr.mxu0 0.0
  %454 = vmatpush1.msra.mxu0 0.0
  %455 = vmatprep.subr.mxu0 0.0
  %456 = vmatpush1.msra.mxu0 0.0
  %457 = vmatprep.subr.mxu0 0.0
  %458 = vmatpush1.msra.mxu0 0.0
  %459 = vmatprep.subr.mxu0 0.0
  %460 = vmatpush1.msra.mxu0 0.0
  %461 = vmatprep.subr.mxu0 0.0
  %462 = vmatpush1.msra.mxu0 0.0
  %463 = vmatprep.subr.mxu0 0.0
  %464 = vmatpush1.msra.mxu0 %v121
  %465 = vmatprep.subr.mxu0 0.0
  %466 = vmatpush1.msra.mxu0 %v120
  %467 = vmatprep.subr.mxu0 0.0
  %468 = vmatpush1.msra.mxu0 %v119
  %469 = vmatprep.subr.mxu0 0.0
  %470 = vmatpush1.msra.mxu0 %v118
  %471 = vmatprep.subr.mxu0 0.0
  %472 = vmatpush2.msra.mxu0 0.0
  %473 = vmatprep.subr.mxu0 0.0
  %474 = vmatpush2.msra.mxu0 0.0
  %475 = vmatprep.subr.mxu0 0.0
  %476 = vmatpush2.msra.mxu0 0.0
  %477 = vmatprep.subr.mxu0 0.0
  %478 = vmatpush2.msra.mxu0 0.0
  %479 = vmatprep.subr.mxu0 0.0
  %480 = vmatpush2.msra.mxu0 0.0
  %481 = vmatprep.subr.mxu0 0.0
  %482 = vmatpush2.msra.mxu0 0.0
  %483 = vmatprep.subr.mxu0 0.0
  %484 = vmatpush2.msra.mxu0 0.0
  %485 = vmatprep.subr.mxu0 0.0
  %486 = vmatpush2.msra.mxu0 0.0
  %487 = vmatprep.subr.mxu0 0.0
  %488 = vmatpush2.msra.mxu0 0.0
  %489 = vmatprep.subr.mxu0 0.0
  %490 = vmatpush2.msra.mxu0 0.0
  %491 = vmatprep.subr.mxu0 0.0
  %492 = vmatpush2.msra.mxu0 0.0
  %493 = vmatprep.subr.mxu0 0.0
  %494 = vmatpush2.msra.mxu0 0.0
  %495 = vmatprep.subr.mxu0 0.0
  %496 = vmatpush2.msra.mxu0 0.0
  %497 = vmatprep.subr.mxu0 0.0
  %498 = vmatpush2.msra.mxu0 0.0
  %499 = vmatprep.subr.mxu0 0.0
  %500 = vmatpush2.msra.mxu0 0.0
  %501 = vmatprep.subr.mxu0 0.0
  %502 = vmatpush2.msra.mxu0 0.0
  %503 = vmatprep.mubr.f32.mxu0 0.0
  %504 = vmatmul.mubr.f32.gmra.mxu0 %v437
  %v505 = vpop.f32.mrf.mxu0
  %v506 = vadd.f32 0.0, %v505
  %v507 = vpop.f32.mrf.mxu0
  %508 = vdwg.mxu0
  %v510 = vrot.slane %v506, 2
  %v512 = vadd.f32 %v110, %v510
  %v513 = vxor.u32 %v512, 2147483648
  %v514 = vmul.f32 %v513, 1.442695
  %v515 = vpow.pop %v514
  %v516 = vadd.f32 %v515, 1.0
  %v517 = vrcp.pop %v516
  %v518 = vmul.f32 1.0, %v517
  %v519 = vtanh.pop %v512
  %v521 = vrot.slane %v426, 6
  %v523 = vmul.f32 %v518, %v521
  %525 = vrot.lane.b32.xlu0 %v519, 32
  %v526 = vpop.permute.xlu0 %525
  %v528 = vmul.f32 %v518, %v526
  %530 = vrot.lane.b32.xlu0 %v528, 32
  %v531 = vpop.permute.xlu0 %530
  %v533 = vadd.f32 %v523, %v531
  %v534 = vtanh.pop %v533
  %536 = vrot.lane.b32.xlu0 %v534, 32
  %v537 = vpop.permute.xlu0 %536
  %v539 = vmul.f32 %v518, %v537
  %v541 = vrot.slane %v539, 6
  %542 = vrot.lane.b32.xlu0 %v541, 64
  %v543 = vpop.permute.xlu0 %542
  %v544 = vsel %vm36, %v543, 0
  %546 = vmatprep.subr.mxu0 0.0
  %547 = vmatpush1.msra.mxu0 0.0
  %548 = vmatprep.subr.mxu0 0.0
  %549 = vmatpush1.msra.mxu0 0.0
  %550 = vmatprep.subr.mxu0 0.0
  %551 = vmatpush1.msra.mxu0 0.0
  %552 = vmatprep.subr.mxu0 0.0
  %553 = vmatpush1.msra.mxu0 0.0
  %554 = vmatprep.subr.mxu0 0.0
  %555 = vmatpush1.msra.mxu0 0.0
  %556 = vmatprep.subr.mxu0 0.0
  %557 = vmatpush1.msra.mxu0 0.0
  %558 = vmatprep.subr.mxu0 0.0
  %559 = vmatpush1.msra.mxu0 0.0
  %560 = vmatprep.subr.mxu0 0.0
  %561 = vmatpush1.msra.mxu0 0.0
  %562 = vmatprep.subr.mxu0 0.0
  %563 = vmatpush1.msra.mxu0 0.0
  %564 = vmatprep.subr.mxu0 0.0
  %565 = vmatpush1.msra.mxu0 0.0
  %566 = vmatprep.subr.mxu0 0.0
  %567 = vmatpush1.msra.mxu0 0.0
  %568 = vmatprep.subr.mxu0 0.0
  %569 = vmatpush1.msra.mxu0 0.0
  %570 = vmatprep.subr.mxu0 0.0
  %571 = vmatpush1.msra.mxu0 %v121
  %572 = vmatprep.subr.mxu0 0.0
  %573 = vmatpush1.msra.mxu0 %v120
  %574 = vmatprep.subr.mxu0 0.0
  %575 = vmatpush1.msra.mxu0 %v119
  %576 = vmatprep.subr.mxu0 0.0
  %577 = vmatpush1.msra.mxu0 %v118
  %578 = vmatprep.subr.mxu0 0.0
  %579 = vmatpush2.msra.mxu0 0.0
  %580 = vmatprep.subr.mxu0 0.0
  %581 = vmatpush2.msra.mxu0 0.0
  %582 = vmatprep.subr.mxu0 0.0
  %583 = vmatpush2.msra.mxu0 0.0
  %584 = vmatprep.subr.mxu0 0.0
  %585 = vmatpush2.msra.mxu0 0.0
  %586 = vmatprep.subr.mxu0 0.0
  %587 = vmatpush2.msra.mxu0 0.0
  %588 = vmatprep.subr.mxu0 0.0
  %589 = vmatpush2.msra.mxu0 0.0
  %590 = vmatprep.subr.mxu0 0.0
  %591 = vmatpush2.msra.mxu0 0.0
  %592 = vmatprep.subr.mxu0 0.0
  %593 = vmatpush2.msra.mxu0 0.0
  %594 = vmatprep.subr.mxu0 0.0
  %595 = vmatpush2.msra.mxu0 0.0
  %596 = vmatprep.subr.mxu0 0.0
  %597 = vmatpush2.msra.mxu0 0.0
  %598 = vmatprep.subr.mxu0 0.0
  %599 = vmatpush2.msra.mxu0 0.0
  %600 = vmatprep.subr.mxu0 0.0
  %601 = vmatpush2.msra.mxu0 0.0
  %602 = vmatprep.subr.mxu0 0.0
  %603 = vmatpush2.msra.mxu0 0.0
  %604 = vmatprep.subr.mxu0 0.0
  %605 = vmatpush2.msra.mxu0 0.0
  %606 = vmatprep.subr.mxu0 0.0
  %607 = vmatpush2.msra.mxu0 0.0
  %608 = vmatprep.subr.mxu0 0.0
  %609 = vmatpush2.msra.mxu0 0.0
  %610 = vmatprep.mubr.f32.mxu0 0.0
  %611 = vmatmul.mubr.f32.gmra.mxu0 %v544
  %v612 = vpop.f32.mrf.mxu0
  %v613 = vadd.f32 0.0, %v612
  %v614 = vpop.f32.mrf.mxu0
  %615 = vdwg.mxu0
  %v616 = vadd.f32 %v115, %v613
  %v617 = vxor.u32 %v616, 2147483648
  %v618 = vmul.f32 %v617, 1.442695
  %v619 = vpow.pop %v618
  %v620 = vadd.f32 %v619, 1.0
  %v621 = vrcp.pop %v620
  %v622 = vmul.f32 1.0, %v621
  %v623 = vtanh.pop %v616
  %v625 = vrot.slane %v533, 6
  %v627 = vmul.f32 %v622, %v625
  %629 = vrot.lane.b32.xlu0 %v623, 32
  %v630 = vpop.permute.xlu0 %629
  %v632 = vmul.f32 %v622, %v630
  %634 = vrot.lane.b32.xlu0 %v632, 32
  %v635 = vpop.permute.xlu0 %634
  %v637 = vadd.f32 %v627, %v635
  %v638 = vtanh.pop %v637
  %640 = vrot.lane.b32.xlu0 %v638, 32
  %v641 = vpop.permute.xlu0 %640
  %v643 = vmul.f32 %v622, %v641
  %645 = vrot.lane.b32.xlu0 %v643, 64
  %v646 = vpop.permute.xlu0 %645
  %v647 = vsel %vm36, %v646, 0
  %649 = vmatprep.subr.mxu0 0.0
  %650 = vmatpush1.msra.mxu0 0.0
  %651 = vmatprep.subr.mxu0 0.0
  %652 = vmatpush1.msra.mxu0 0.0
  %653 = vmatprep.subr.mxu0 0.0
  %654 = vmatpush1.msra.mxu0 0.0
  %655 = vmatprep.subr.mxu0 0.0
  %656 = vmatpush1.msra.mxu0 0.0
  %657 = vmatprep.subr.mxu0 0.0
  %658 = vmatpush1.msra.mxu0 0.0
  %659 = vmatprep.subr.mxu0 0.0
  %660 = vmatpush1.msra.mxu0 0.0
  %661 = vmatprep.subr.mxu0 0.0
  %662 = vmatpush1.msra.mxu0 0.0
  %663 = vmatprep.subr.mxu0 0.0
  %664 = vmatpush1.msra.mxu0 0.0
  %665 = vmatprep.subr.mxu0 0.0
  %666 = vmatpush1.msra.mxu0 0.0
  %667 = vmatprep.subr.mxu0 0.0
  %668 = vmatpush1.msra.mxu0 0.0
  %669 = vmatprep.subr.mxu0 0.0
  %670 = vmatpush1.msra.mxu0 0.0
  %671 = vmatprep.subr.mxu0 0.0
  %672 = vmatpush1.msra.mxu0 0.0
  %673 = vmatprep.subr.mxu0 0.0
  %674 = vmatpush1.msra.mxu0 %v121
  %675 = vmatprep.subr.mxu0 0.0
  %676 = vmatpush1.msra.mxu0 %v120
  %677 = vmatprep.subr.mxu0 0.0
  %678 = vmatpush1.msra.mxu0 %v119
  %679 = vmatprep.subr.mxu0 0.0
  %680 = vmatpush1.msra.mxu0 %v118
  %681 = vmatprep.subr.mxu0 0.0
  %682 = vmatpush2.msra.mxu0 0.0
  %683 = vmatprep.subr.mxu0 0.0
  %684 = vmatpush2.msra.mxu0 0.0
  %685 = vmatprep.subr.mxu0 0.0
  %686 = vmatpush2.msra.mxu0 0.0
  %687 = vmatprep.subr.mxu0 0.0
  %688 = vmatpush2.msra.mxu0 0.0
  %689 = vmatprep.subr.mxu0 0.0
  %690 = vmatpush2.msra.mxu0 0.0
  %691 = vmatprep.subr.mxu0 0.0
  %692 = vmatpush2.msra.mxu0 0.0
  %693 = vmatprep.subr.mxu0 0.0
  %694 = vmatpush2.msra.mxu0 0.0
  %695 = vmatprep.subr.mxu0 0.0
  %696 = vmatpush2.msra.mxu0 0.0
  %697 = vmatprep.subr.mxu0 0.0
  %698 = vmatpush2.msra.mxu0 0.0
  %699 = vmatprep.subr.mxu0 0.0
  %700 = vmatpush2.msra.mxu0 0.0
  %701 = vmatprep.subr.mxu0 0.0
  %702 = vmatpush2.msra.mxu0 0.0
  %703 = vmatprep.subr.mxu0 0.0
  %704 = vmatpush2.msra.mxu0 0.0
  %705 = vmatprep.subr.mxu0 0.0
  %706 = vmatpush2.msra.mxu0 0.0
  %707 = vmatprep.subr.mxu0 0.0
  %708 = vmatpush2.msra.mxu0 0.0
  %709 = vmatprep.subr.mxu0 0.0
  %710 = vmatpush2.msra.mxu0 0.0
  %711 = vmatprep.subr.mxu0 0.0
  %712 = vmatpush2.msra.mxu0 0.0
  %713 = vmatprep.mubr.f32.mxu0 0.0
  %714 = vmatmul.mubr.f32.gmra.mxu0 %v647
  %v715 = vpop.f32.mrf.mxu0
  %v716 = vadd.f32 0.0, %v715
  %v717 = vpop.f32.mrf.mxu0
  %718 = vdwg.mxu0
  %v720 = vrot.slane %v716, 6
  %v722 = vadd.f32 %v115, %v720
  %v723 = vxor.u32 %v722, 2147483648
  %v724 = vmul.f32 %v723, 1.442695
  %v725 = vpow.pop %v724
  %v726 = vadd.f32 %v725, 1.0
  %v727 = vrcp.pop %v726
  %v728 = vmul.f32 1.0, %v727
  %v729 = vtanh.pop %v722
  %v731 = vrot.slane %v637, 6
  %v733 = vmul.f32 %v728, %v731
  %735 = vrot.lane.b32.xlu0 %v729, 32
  %v736 = vpop.permute.xlu0 %735
  %v738 = vmul.f32 %v728, %v736
  %740 = vrot.lane.b32.xlu0 %v738, 32
  %v741 = vpop.permute.xlu0 %740
  %v743 = vadd.f32 %v733, %v741
  %v744 = vtanh.pop %v743
  %746 = vrot.lane.b32.xlu0 %v744, 32
  %v747 = vpop.permute.xlu0 %746
  %v749 = vmul.f32 %v728, %v747
  %vm750 = vcmask 1041408
  %v751 = vsel %vm750, %v219, %v325
  %vm752 = vcmask 1043456
  %v753 = vsel %vm752, %v751, %v432
  %vm754 = vcmask 1045504
  %v755 = vsel %vm754, %v753, %v539
  %v756 = vsel %vm750, %v643, %v749
  %v757 = vld [vmem:[%s4] sm:$0xff]
  %v758 = vld [vmem:[%s4 + $0x8] sm:$0xff]
  %v759 = vld [vmem:[%s4 + $0x10] sm:$0xff]
  %v760 = vld [vmem:[%s4 + $0x18] sm:$0xff]
  %v761 = vld [vmem:[%s5] sm:$0x1]
  %v763 = vlaneseq
  %v764 = vshrl.u32 %v763, 7
  %v765 = vsub.s32 0, %v764
  %v766 = vrot.slane %v761, %v765
  %770 = vrot.lane.b32.xlu0 %v755, 64
  %v771 = vpop.permute.xlu0 %770
  %772 = vrot.lane.b32.xlu0 %v756, 64
  %v773 = vpop.permute.xlu0 %772
  %v774 = vsel %vm36, %v771, 0
  %v776 = vsel %vm36, %v773, 0
  %778 = vmatprep.subr.mxu0 0.0
  %779 = vmatpush1.msra.mxu0 0.0
  %780 = vmatprep.subr.mxu0 0.0
  %781 = vmatpush1.msra.mxu0 0.0
  %782 = vmatprep.subr.mxu0 0.0
  %783 = vmatpush1.msra.mxu0 0.0
  %784 = vmatprep.subr.mxu0 0.0
  %785 = vmatpush1.msra.mxu0 0.0
  %786 = vmatprep.subr.mxu0 0.0
  %787 = vmatpush1.msra.mxu0 0.0
  %788 = vmatprep.subr.mxu0 0.0
  %789 = vmatpush1.msra.mxu0 0.0
  %790 = vmatprep.subr.mxu0 0.0
  %791 = vmatpush1.msra.mxu0 0.0
  %792 = vmatprep.subr.mxu0 0.0
  %793 = vmatpush1.msra.mxu0 0.0
  %794 = vmatprep.subr.mxu0 0.0
  %795 = vmatpush1.msra.mxu0 0.0
  %796 = vmatprep.subr.mxu0 0.0
  %797 = vmatpush1.msra.mxu0 0.0
  %798 = vmatprep.subr.mxu0 0.0
  %799 = vmatpush1.msra.mxu0 0.0
  %800 = vmatprep.subr.mxu0 0.0
  %801 = vmatpush1.msra.mxu0 0.0
  %802 = vmatprep.subr.mxu0 0.0
  %803 = vmatpush1.msra.mxu0 %v760
  %804 = vmatprep.subr.mxu0 0.0
  %805 = vmatpush1.msra.mxu0 %v759
  %806 = vmatprep.subr.mxu0 0.0
  %807 = vmatpush1.msra.mxu0 %v758
  %808 = vmatprep.subr.mxu0 0.0
  %809 = vmatpush1.msra.mxu0 %v757
  %810 = vmatprep.subr.mxu0 0.0
  %811 = vmatpush2.msra.mxu0 0.0
  %812 = vmatprep.subr.mxu0 0.0
  %813 = vmatpush2.msra.mxu0 0.0
  %814 = vmatprep.subr.mxu0 0.0
  %815 = vmatpush2.msra.mxu0 0.0
  %816 = vmatprep.subr.mxu0 0.0
  %817 = vmatpush2.msra.mxu0 0.0
  %818 = vmatprep.subr.mxu0 0.0
  %819 = vmatpush2.msra.mxu0 0.0
  %820 = vmatprep.subr.mxu0 0.0
  %821 = vmatpush2.msra.mxu0 0.0
  %822 = vmatprep.subr.mxu0 0.0
  %823 = vmatpush2.msra.mxu0 0.0
  %824 = vmatprep.subr.mxu0 0.0
  %825 = vmatpush2.msra.mxu0 0.0
  %826 = vmatprep.subr.mxu0 0.0
  %827 = vmatpush2.msra.mxu0 0.0
  %828 = vmatprep.subr.mxu0 0.0
  %829 = vmatpush2.msra.mxu0 0.0
  %830 = vmatprep.subr.mxu0 0.0
  %831 = vmatpush2.msra.mxu0 0.0
  %832 = vmatprep.subr.mxu0 0.0
  %833 = vmatpush2.msra.mxu0 0.0
  %834 = vmatprep.subr.mxu0 0.0
  %835 = vmatpush2.msra.mxu0 0.0
  %836 = vmatprep.subr.mxu0 0.0
  %837 = vmatpush2.msra.mxu0 0.0
  %838 = vmatprep.subr.mxu0 0.0
  %839 = vmatpush2.msra.mxu0 0.0
  %840 = vmatprep.subr.mxu0 0.0
  %841 = vmatpush2.msra.mxu0 0.0
  %842 = vmatprep.mubr.f32.mxu0 0.0
  %843 = vmatmul.mubr.f32.gmra.mxu0 %v774
  %v844 = vpop.f32.mrf.mxu0
  %v845 = vadd.f32 %v766, %v844
  %v846 = vpop.f32.mrf.mxu0
  %847 = vmatprep.mubr.f32.mxu0 0.0
  %848 = vmatmul.mubr.f32.gmra.mxu0 %v776
  %v849 = vpop.f32.mrf.mxu0
  %v850 = vadd.f32 %v766, %v849
  %v851 = vpop.f32.mrf.mxu0
  %852 = vdwg.mxu0
  %vm853 = vcmp.ge.f32.partialorder %v845, 0.0
  %vm854 = vcmp.ge.f32.partialorder %v850, 0.0
  %v855 = vmul.f32 %v845, 0.01
  %v856 = vmul.f32 %v850, 0.01
  %v857 = vsel %vm853, %v845, %v855
  %v858 = vsel %vm854, %v850, %v856
  %vm859 = vcmask 130048
  %860 = vst.msk [vmem:[%s6] sm:$0xff] %vm859, %v857
  %vm861 = vcmask 125952
  %862 = vst.msk [vmem:[%s6 + $0x8] sm:$0xf] %vm861, %v858
  // Predicated region
  $region26: #{lstm_net_forward.1} parent=0 // pred_check
    _
  $region27: #{lstm_net_forward.1} parent=0 // pred_check_branch
    %864 = sbr.rel (0) target = $region29
  $region28: #{lstm_net_forward.1} parent=0 // pred_region
    _
  $region29: #{lstm_net_forward.1} parent=0 // pred_fallthru
    _
  // Predicated region
  $region30: #{lstm_net_forward.1} parent=0 // pred_check
    _
  $region31: #{lstm_net_forward.1} parent=0 // pred_check_branch
    %866 = sbr.rel (0) target = $region33
  $region32: #{lstm_net_forward.1} parent=0 // pred_region
    _
  $region33: #{lstm_net_forward.1} parent=0 // pred_fallthru
    _

</llo_original>
